<compile_context>
chip_gen: v6e
topology: v6e:2x2x1
jax: 0.10.0
libtpu: 0.0.40
codegen_flags: <defaults>
</compile_context>

<pallas_src>
import numpy as np
import jax
import jax.numpy as jnp
from jax.experimental import pallas as pl
from jax.experimental.pallas import tpu as pltpu


def _round_up(x, m):
    return ((x + m - 1) // m) * m


# ----------------------------------------------------------------------------
# Fused multi-layer kernel.
#   grid = (num_batch_tiles, num_layers)   (batch "parallel", layers "arbitrary")
#   x_ref   : (TB, NN)      padded initial node-value buffer (inputs in cols :n_in)
#   w_ref   : (1, NN, N)    layer l's full-node-width, pre-transposed weight
#   s_ref   : (1, N, NN)    layer l's one-hot scatter matrix
#   b_ref   : (1, 1, N)     layer l's bias (zero-padded)
#   out_ref : (TB, NN)      final node-value buffer
#   vals_ref: (TB, NN)      VMEM scratch, resident across the layer loop
# ----------------------------------------------------------------------------
def _fused_ffn_kernel(x_ref, w_ref, s_ref, b_ref, out_ref, vals_ref):
    layer = pl.program_id(1)

    @pl.when(layer == 0)
    def _():
        vals_ref[...] = x_ref[...]

    v = vals_ref[...]                                             # (TB, NN)
    h = jnp.dot(v, w_ref[0], preferred_element_type=jnp.float32)  # (TB, N)
    h = jnp.maximum(h + b_ref[0], 0.0)                            # bias + ReLU
    # One-hot scatter: add == set (each node column written by exactly one layer).
    vals_ref[...] = v + jnp.dot(h, s_ref[0],
                                preferred_element_type=jnp.float32)

    @pl.when(layer == pl.num_programs(1) - 1)
    def _():
        out_ref[...] = vals_ref[...]


# ----------------------------------------------------------------------------
# Network definition mirroring NNLayer / TorchFeedForwardNetwork (no torch).
# ----------------------------------------------------------------------------
class LayerDef:
    """JAX-side equivalent of NNLayer after weight setting + pruning."""

    def __init__(self, nodes, biases, links):
        self.nodes = list(nodes)
        self.links = list(links)
        self.inputs = self._get_inputs(links)          # unique, sorted inodes
        self.biases = [float(b) for b in biases]

        n_out, n_in = len(self.nodes), len(self.inputs)
        in_map = {inode: i for i, inode in enumerate(self.inputs)}
        out_map = {onode: o for o, onode in enumerate(self.nodes)}

        # Effective (pruned) weight, torch.nn.Linear (out, in) layout — used
        # only by the pure-JAX reference.  The Pallas path folds links directly
        # into the full-node-width matrices at network construction time.
        w = np.zeros((n_out, n_in), dtype=np.float32)
        for (o, i, weight) in links:
            w[out_map[o], in_map[i]] = weight
        self.W = jnp.asarray(w)
        self.b = jnp.asarray(np.asarray(self.biases, dtype=np.float32))

    @staticmethod
    def _get_inputs(links):
        inodes = []
        for _, inode, *_ in links:
            if inode not in inodes:
                inodes.append(inode)
        inodes.sort()
        return inodes


class FeedForwardNetworkPallas:
    def __init__(self, input_nodes, output_nodes, layers, node_mapping):
        self.input_nodes = list(input_nodes)
        self.output_nodes = list(output_nodes)
        self.layers = layers
        self.node_mapping = dict(node_mapping)
        self.num_nodes = len(node_mapping)

        L = len(layers)
        self.L = L
        # Lane-dense padding: node dim and per-layer output dim -> multiples of 128.
        self.NN_pad = max(128, _round_up(self.num_nodes, 128))
        max_n_out = max(len(l.nodes) for l in layers)
        self.N_pad = max(128, _round_up(max_n_out, 128))

        # Static fold: per-layer full-node-width, pre-transposed weights,
        # one-hot scatter matrices and padded biases (done once, at init).
        w_stack = np.zeros((L, self.NN_pad, self.N_pad), dtype=np.float32)
        s_stack = np.zeros((L, self.N_pad, self.NN_pad), dtype=np.float32)
        b_stack = np.zeros((L, 1, self.N_pad), dtype=np.float32)
        for li, layer in enumerate(layers):
            out_map = {onode: o for o, onode in enumerate(layer.nodes)}
            for (o, i, weight) in layer.links:
                w_stack[li, self.node_mapping[i], out_map[o]] = weight
            for j, node in enumerate(layer.nodes):
                s_stack[li, j, self.node_mapping[node]] = 1.0
                b_stack[li, 0, j] = layer.biases[j]
        self.w_stack = jnp.asarray(w_stack)
        self.s_stack = jnp.asarray(s_stack)
        self.b_stack = jnp.asarray(b_stack)

        self.res_idx = jnp.asarray(
            [self.node_mapping[o] for o in self.output_nodes], dtype=jnp.int32)

        self._fwd_cache = {}          # cached jitted forward per batch size

    # ---------------------------------------------------------------- forward
    def _build_forward(self, B):
        NN, N, L = self.NN_pad, self.N_pad, self.L
        # Batch tile: sublane-aligned; capped so double-buffered VMEM residency
        # stays small even on v7x's 64 MiB VMEM.  Batch axis is "parallel".
        if B <= 512:
            B_pad = max(8, _round_up(B, 8))
            TB = B_pad
        else:
            TB = 512
            B_pad = _round_up(B, TB)
        n_bt = B_pad // TB
        n_in = len(self.input_nodes)

        fused = pl.pallas_call(
            _fused_ffn_kernel,
            out_shape=jax.ShapeDtypeStruct((B_pad, NN), jnp.float32),
            grid=(n_bt, L),
            in_specs=[
                pl.BlockSpec((TB, NN), lambda b, l: (b, 0)),
                pl.BlockSpec((1, NN, N), lambda b, l: (l, 0, 0)),
                pl.BlockSpec((1, N, NN), lambda b, l: (l, 0, 0)),
                pl.BlockSpec((1, 1, N), lambda b, l: (l, 0, 0)),
            ],
            out_specs=pl.BlockSpec((TB, NN), lambda b, l: (b, 0)),
            scratch_shapes=[pltpu.VMEM((TB, NN), jnp.float32)],
            compiler_params=pltpu.CompilerParams(
                dimension_semantics=("parallel", "arbitrary")),
        )

        w_stack, s_stack, b_stack = self.w_stack, self.s_stack, self.b_stack
        res_idx = self.res_idx

        @jax.jit
        def fwd(x):
            # One-time pad of the input into the node-value layout
            # (values[:, :n_in] = x, rest zero), exactly like the reference.
            x_pad = jnp.zeros((B_pad, NN), dtype=jnp.float32)
            x_pad = x_pad.at[:B, :n_in].set(x.astype(jnp.float32))
            vals = fused(x_pad, w_stack, s_stack, b_stack)
            # Final tiny output gather (one-time glue outside the kernel).
            return jnp.take(vals[:B], res_idx, axis=1)

        return fwd

    def forward(self, x):
        if len(self.input_nodes) != x.shape[1]:
            raise RuntimeError(
                "Expected {0:n} inputs, got {1:n}".format(
                    len(self.input_nodes), x.shape[1]))
        x = jnp.asarray(x, dtype=jnp.float32)
        B = int(x.shape[0])
        if B not in self._fwd_cache:
            self._fwd_cache[B] = self._build_forward(B)
        return self._fwd_cache[B](x)


# ----------------------------------------------------------------------------
# Pure-JAX reference: literal transcription of TorchFeedForwardNetwork.forward
# ----------------------------------------------------------------------------
def _pure_jax_reference(net, x):
    x = jnp.asarray(x, dtype=jnp.float32)
    B = x.shape[0]
    values = jnp.zeros((B, net.num_nodes), dtype=jnp.float32)
    values = values.at[:, : x.shape[1]].set(x)
    for layer in net.layers:
        in_idx = jnp.asarray([net.node_mapping[i] for i in layer.inputs])
        ni = values[:, in_idx]
        out = jnp.maximum(ni @ layer.W.T + layer.b, 0.0)
        out_idx = jnp.asarray([net.node_mapping[n] for n in layer.nodes])
        values = values.at[:, out_idx].set(out)
    res_idx = jnp.asarray([net.node_mapping[o] for o in net.output_nodes])
    return values[:, res_idx]


if __name__ == "__main__":
    key = jax.random.PRNGKey(0)

    # --- deterministic synthetic genome / network ---------------------------
    input_nodes = [-1, -2, -3, -4]          # NEAT-style negative input keys
    output_nodes = [0, 1]
    genome_node_order = [0, 1, 2, 3, 4, 5]  # outputs 0,1 and hidden 2..5

    node_mapping = {}
    for i, k in enumerate(sorted(input_nodes)):          # -4,-3,-2,-1 -> 0..3
        node_mapping[k] = i
    for i, n in enumerate(genome_node_order):            # 0..5 -> 4..9
        node_mapping[n] = len(input_nodes) + i

    # deterministic link weights / biases
    key, wk, bk = jax.random.split(key, 3)
    wvals = np.asarray(jax.random.normal(wk, (32,), dtype=jnp.float32))
    bvals = np.asarray(jax.random.normal(bk, (8,), dtype=jnp.float32))
    wi = iter(wvals)

    # hidden layer: nodes 2,3,4,5 fed (sparsely) by the inputs
    links1 = [
        (2, -4, float(next(wi))), (2, -2, float(next(wi))),
        (3, -3, float(next(wi))), (3, -1, float(next(wi))),
        (4, -4, float(next(wi))), (4, -1, float(next(wi))),
        (5, -2, float(next(wi))), (5, -3, float(next(wi))), (5, -1, float(next(wi))),
    ]
    layer1 = LayerDef(nodes=[2, 3, 4, 5],
                      biases=[float(bvals[2]), float(bvals[3]),
                              float(bvals[4]), float(bvals[5])],
                      links=links1)

    # output layer: nodes 0,1 fed by hidden nodes and a couple of raw inputs
    links2 = [
        (0, 2, float(next(wi))), (0, 4, float(next(wi))), (0, -1, float(next(wi))),
        (1, 3, float(next(wi))), (1, 5, float(next(wi))), (1, -2, float(next(wi))),
    ]
    layer2 = LayerDef(nodes=[0, 1],
                      biases=[float(bvals[0]), float(bvals[1])],
                      links=links2)

    net = FeedForwardNetworkPallas(input_nodes, output_nodes,
                                   [layer1, layer2], node_mapping)

    # --- example input: (batch=2, n_inputs=4) --------------------------------
    key, xk = jax.random.split(key)
    x = jax.random.normal(xk, (2, len(input_nodes)), dtype=jnp.float32)

    out = net.forward(x)
    out = jax.block_until_ready(out)

    ref = jax.block_until_ready(_pure_jax_reference(net, x))
    np.testing.assert_allclose(np.asarray(out), np.asarray(ref),
                               rtol=1e-5, atol=1e-5)

    print("KERNEL_OK")
</pallas_src>

<mosaic_0001>
module attributes {stable_mosaic.version = 11 : i64} {
  func.func @_fused_ffn_kernel(%arg0: i32, %arg1: i32, %arg2: memref<8x128xf32, #tpu.memory_space<vmem>>, %arg3: memref<1x128x128xf32, #tpu.memory_space<vmem>>, %arg4: memref<1x128x128xf32, #tpu.memory_space<vmem>>, %arg5: memref<1x1x128xf32, #tpu.memory_space<vmem>>, %arg6: memref<8x128xf32, #tpu.memory_space<vmem>>, %arg7: memref<8x128xf32, #tpu.memory_space<vmem>>) attributes {dimension_semantics = [#tpu.dimension_semantics<parallel>, #tpu.dimension_semantics<arbitrary>], iteration_bounds = array<i64: 1, 2>, scalar_prefetch = 0 : i64, scratch_operands = 1 : i64, tpu.core_type = #tpu.core_type<tc>, window_params = [{transform_indices = @transform_0, window_bounds = array<i64: 8, 128>}, {transform_indices = @transform_1, window_bounds = array<i64: 1, 128, 128>}, {transform_indices = @transform_2, window_bounds = array<i64: 1, 128, 128>}, {transform_indices = @transform_3, window_bounds = array<i64: 1, 1, 128>}, {transform_indices = @transform_4, window_bounds = array<i64: 8, 128>}]} {
    %c0_i32 = arith.constant 0 : i32
    %0 = arith.cmpi eq, %arg1, %c0_i32 : i32
    %1 = arith.extui %0 : i1 to i32
    %c0_i32_0 = arith.constant 0 : i32
    %2 = arith.cmpi ne, %1, %c0_i32_0 : i32
    scf.if %2 {
      %c0_16 = arith.constant 0 : index
      %c0_17 = arith.constant 0 : index
      %21 = vector.load %arg2[%c0_16, %c0_17] : memref<8x128xf32, #tpu.memory_space<vmem>>, vector<8x128xf32>
      %c0_18 = arith.constant 0 : index
      %c0_19 = arith.constant 0 : index
      %22 = vector.load %arg7[%c0_18, %c0_19] : memref<8x128xf32, #tpu.memory_space<vmem>>, vector<8x128xf32>
      tpu.vector_store %arg7[%c0_18, %c0_19], %21 {strides = array<i32>} : memref<8x128xf32, #tpu.memory_space<vmem>>, vector<8x128xf32>,
    } else {
    }
    %c0 = arith.constant 0 : index
    %c0_1 = arith.constant 0 : index
    %3 = vector.load %arg7[%c0, %c0_1] : memref<8x128xf32, #tpu.memory_space<vmem>>, vector<8x128xf32>
    %c0_2 = arith.constant 0 : index
    %c0_3 = arith.constant 0 : index
    %c0_4 = arith.constant 0 : index
    %4 = vector.load %arg3[%c0_2, %c0_3, %c0_4] : memref<1x128x128xf32, #tpu.memory_space<vmem>>, vector<1x128x128xf32>
    %5 = vector.shape_cast %4 : vector<1x128x128xf32> to vector<128x128xf32>
    %cst = arith.constant dense<0.000000e+00> : vector<8x128xf32>
    %6 = tpu.matmul %3, %5, %cst {dimension_numbers = #tpu.dot_dimension_numbers<[1], [0], [0], [1], [0, 0, 1, 1], [], []>} : vector<8x128xf32>, vector<128x128xf32>, vector<8x128xf32> -> vector<8x128xf32>
    %c0_5 = arith.constant 0 : index
    %c0_6 = arith.constant 0 : index
    %c0_7 = arith.constant 0 : index
    %7 = vector.load %arg5[%c0_5, %c0_6, %c0_7] : memref<1x1x128xf32, #tpu.memory_space<vmem>>, vector<1x1x128xf32>
    %8 = vector.shape_cast %7 : vector<1x1x128xf32> to vector<1x128xf32>
    %9 = vector.broadcast %8 : vector<1x128xf32> to vector<8x128xf32>
    %10 = arith.addf %6, %9 : vector<8x128xf32>
    %cst_8 = arith.constant 0.000000e+00 : f32
    %11 = vector.broadcast %cst_8 : f32 to vector<8x128xf32>
    %12 = arith.maximumf %10, %11 : vector<8x128xf32>
    %c0_9 = arith.constant 0 : index
    %c0_10 = arith.constant 0 : index
    %c0_11 = arith.constant 0 : index
    %13 = vector.load %arg4[%c0_9, %c0_10, %c0_11] : memref<1x128x128xf32, #tpu.memory_space<vmem>>, vector<1x128x128xf32>
    %14 = vector.shape_cast %13 : vector<1x128x128xf32> to vector<128x128xf32>
    %cst_12 = arith.constant dense<0.000000e+00> : vector<8x128xf32>
    %15 = tpu.matmul %12, %14, %cst_12 {dimension_numbers = #tpu.dot_dimension_numbers<[1], [0], [0], [1], [0, 0, 1, 1], [], []>} : vector<8x128xf32>, vector<128x128xf32>, vector<8x128xf32> -> vector<8x128xf32>
    %16 = arith.addf %3, %15 : vector<8x128xf32>
    %c0_13 = arith.constant 0 : index
    %c0_14 = arith.constant 0 : index
    %17 = vector.load %arg7[%c0_13, %c0_14] : memref<8x128xf32, #tpu.memory_space<vmem>>, vector<8x128xf32>
    tpu.vector_store %arg7[%c0_13, %c0_14], %16 {strides = array<i32>} : memref<8x128xf32, #tpu.memory_space<vmem>>, vector<8x128xf32>,
    %c1_i32 = arith.constant 1 : i32
    %18 = arith.cmpi eq, %arg1, %c1_i32 : i32
    %19 = arith.extui %18 : i1 to i32
    %c0_i32_15 = arith.constant 0 : i32
    %20 = arith.cmpi ne, %19, %c0_i32_15 : i32
    scf.if %20 {
      %c0_16 = arith.constant 0 : index
      %c0_17 = arith.constant 0 : index
      %21 = vector.load %arg7[%c0_16, %c0_17] : memref<8x128xf32, #tpu.memory_space<vmem>>, vector<8x128xf32>
      %c0_18 = arith.constant 0 : index
      %c0_19 = arith.constant 0 : index
      %22 = vector.load %arg6[%c0_18, %c0_19] : memref<8x128xf32, #tpu.memory_space<vmem>>, vector<8x128xf32>
      tpu.vector_store %arg6[%c0_18, %c0_19], %21 {strides = array<i32>} : memref<8x128xf32, #tpu.memory_space<vmem>>, vector<8x128xf32>,
    } else {
    }
    return
  }
  func.func @transform_0(%arg0: i32, %arg1: i32) -> (i32, i32) {
    %c0_i32 = arith.constant 0 : i32
    %c0_i32_0 = arith.constant 0 : i32
    return %arg0, %c0_i32 : i32, i32
  }
  func.func @transform_1(%arg0: i32, %arg1: i32) -> (i32, i32, i32) {
    %c0_i32 = arith.constant 0 : i32
    %c0_i32_0 = arith.constant 0 : i32
    %c0_i32_1 = arith.constant 0 : i32
    return %arg1, %c0_i32, %c0_i32_0 : i32, i32, i32
  }
  func.func @transform_2(%arg0: i32, %arg1: i32) -> (i32, i32, i32) {
    %c0_i32 = arith.constant 0 : i32
    %c0_i32_0 = arith.constant 0 : i32
    %c0_i32_1 = arith.constant 0 : i32
    return %arg1, %c0_i32, %c0_i32_0 : i32, i32, i32
  }
  func.func @transform_3(%arg0: i32, %arg1: i32) -> (i32, i32, i32) {
    %c0_i32 = arith.constant 0 : i32
    %c0_i32_0 = arith.constant 0 : i32
    %c0_i32_1 = arith.constant 0 : i32
    return %arg1, %c0_i32, %c0_i32_0 : i32, i32, i32
  }
  func.func @transform_4(%arg0: i32, %arg1: i32) -> (i32, i32) {
    %c0_i32 = arith.constant 0 : i32
    %c0_i32_0 = arith.constant 0 : i32
    return %arg0, %c0_i32 : i32, i32
  }
}

</mosaic_0001>

<llo_original>
// kernel: fwd.1
$region0: #{fwd.1}
  #allocation0 [shape = 'u32[]', space=smem, size = 0x4, offset = 0x4, fixed_abs, tag = 'smem constant byte address 0x4 - core index']
  #allocation1 [shape = 'u32[144,128]{1,0:T(1,128)}', space=vmem, size = 0x12000, scoped, tag = 'internal scratch']
  #allocation2 [shape = 'f32[8,128]{1,0:T(8,128)}', space=vmem, size = 0x1000, scoped, tag = 'scratch operand']
  %s0 = inlined_call_operand.vmem [shape: f32[8,128], index: 0, kind: input, shape index: {}]
  %s1 = inlined_call_operand.hbm [shape: f32[2,128,128], index: 1, kind: input, shape index: {}]
  %s2 = inlined_call_operand.hbm [shape: f32[2,128,128], index: 2, kind: input, shape index: {}]
  %s3 = inlined_call_operand.vmem [shape: f32[2,1,128], index: 3, kind: input, shape index: {}]
  %s4 = inlined_call_operand.vmem [shape: f32[8,128], index: 4, kind: output, shape index: {}]
  %s5 = sld [smem:[#allocation0]]
  $region65: #{fwd.1} parent=0
    _
  %s7 = ssub.s32 1, %s5
  %s8 = scalar_select 0, %s7, %s5
  $region1: #{fwd.1} parent=0
    #allocation3 [shape = 'u8[131072]{0}', space=vmem, size = 0x20000, scoped, tag = 'input window, operand 1']
    #allocation4 [shape = 's32[2]{0}', space=sflag, size = 0x8, scoped, tag = 'scoped memory for fwd.1']
    #allocation5 [shape = 'u8[131072]{0}', space=vmem, size = 0x20000, scoped, tag = 'input window, operand 2']
    #allocation6 [shape = 's32[2]{0}', space=sflag, size = 0x8, scoped, tag = 'scoped memory for fwd.1']
    %9 = vsyncpa [#allocation4], 0
    %s10 = scalar_lea.sflag [#allocation4], 1
    %11 = vsyncpa %s10, 0
    %12 = vsyncpa [#allocation6], 0
    %s13 = scalar_lea.sflag [#allocation6], 1
    %14 = vsyncpa %s13, 0
    loop: start=0, step=1, limit=4
    $region2: #{fwd.1} parent=1 // loop_pre_header
      _
    $region3: #{fwd.1} parent=1 // loop_header
      %s16 = sphi 0, %s20
      %p17 = scmp.ge.s32.totalorder %s16, 4
      %s23 = sphi 0, %s35
      %s24 = sphi 0, %s31
      %s25 = sphi 0, %s23
      %s26 = sphi 0, %s24
      %s27 = sphi 0, %s25
      %s28 = sphi 0, %s26
      %s38 = sphi 0, %s40
      %s41 = sphi 0, %s38
      %s42 = sphi 0, %s41
      %s58 = sphi 0, %s42
      %s64 = sphi 0, %s66
      %s67 = sphi 0, %s64
      %s68 = sphi 0, %s67
      %s84 = sphi 0, %s68
      %s90 = sphi 0, %s92
      %s93 = sphi 0, %s90
      %s94 = sphi 0, %s93
      %s110 = sphi 0, %s94
      %s116 = sphi 0, %s118
      %s119 = sphi 0, %s116
      %s120 = sphi 0, %s119
      %s136 = sphi 0, %s120
      %s142 = sphi 0, %s144
      %s145 = sphi 0, %s142
      %s146 = sphi 0, %s145
      %s162 = sphi 0, %s146
    $region4: #{fwd.1} parent=1 // loop_header_branch
      %19 = sbr.rel (%p17) target = $region8
    $region5: #{fwd.1} parent=1 // loop_body
      %s21 = ssub.s32 %s16, 1
      %s22 = ssub.s32 %s16, 2
      %s29 = sadd.s32 1, %s24
      %p30 = scmp.ge.s32.totalorder %s29, 2
      %s31 = scalar_select %p30, 0, %s29
      %s32 = sadd.s32 1, %s23
      %s33 = scalar_select %p30, %s32, %s23
      %p34 = scmp.ge.s32.totalorder %s33, 1
      %s35 = scalar_select %p34, 0, %s33
      %s36 = ssub.s32 %s23, %s35
      %p37 = scmp.eq.s32.totalorder %s36, 0
      %s39 = sadd.s32 %s38, 1
      %s40 = scalar_select %p37, %s38, %s39
      %p43 = pneg %p37
      %p44 = scmp.eq.s32.totalorder %s16, 1
      %p45 = por %p43, %p44
      %p46 = scmp.ne.s32.totalorder %s38, %s41
      %p47 = scmp.eq.s32.totalorder %s16, 0
      %p48 = por %p46, %p47
      %p49 = scmp.ne.s32.totalorder %s38, %s41
      %p50 = scmp.eq.s32.totalorder %s21, 1
      %p51 = por %p49, %p50
      %p52 = scmp.ne.s32.totalorder %s41, %s42
      %p53 = scmp.eq.s32.totalorder %s21, 0
      %p54 = por %p52, %p53
      %p55 = scmp.ne.s32.totalorder %s41, %s42
      %p56 = scmp.eq.s32.totalorder %s22, 1
      %p57 = por %p55, %p56
      %p59 = scmp.ne.s32.totalorder %s42, %s58
      %p60 = scmp.eq.s32.totalorder %s22, 0
      %p61 = por %p59, %p60
      %s62 = ssub.s32 %s24, %s31
      %p63 = scmp.eq.s32.totalorder %s62, 0
      %s65 = sadd.s32 %s64, 1
      %s66 = scalar_select %p63, %s64, %s65
      %p69 = pneg %p63
      %p70 = scmp.eq.s32.totalorder %s16, 1
      %p71 = por %p69, %p70
      %p72 = scmp.ne.s32.totalorder %s64, %s67
      %p73 = scmp.eq.s32.totalorder %s16, 0
      %p74 = por %p72, %p73
      %p75 = scmp.ne.s32.totalorder %s64, %s67
      %p76 = scmp.eq.s32.totalorder %s21, 1
      %p77 = por %p75, %p76
      %p78 = scmp.ne.s32.totalorder %s67, %s68
      %p79 = scmp.eq.s32.totalorder %s21, 0
      %p80 = por %p78, %p79
      %p81 = scmp.ne.s32.totalorder %s67, %s68
      %p82 = scmp.eq.s32.totalorder %s22, 1
      %p83 = por %p81, %p82
      %p85 = scmp.ne.s32.totalorder %s68, %s84
      %p86 = scmp.eq.s32.totalorder %s22, 0
      %p87 = por %p85, %p86
      %s88 = ssub.s32 %s24, %s31
      %p89 = scmp.eq.s32.totalorder %s88, 0
      %s91 = sadd.s32 %s90, 1
      %s92 = scalar_select %p89, %s90, %s91
      %p95 = pneg %p89
      %p96 = scmp.eq.s32.totalorder %s16, 1
      %p97 = por %p95, %p96
      %p98 = scmp.ne.s32.totalorder %s90, %s93
      %p99 = scmp.eq.s32.totalorder %s16, 0
      %p100 = por %p98, %p99
      %p101 = scmp.ne.s32.totalorder %s90, %s93
      %p102 = scmp.eq.s32.totalorder %s21, 1
      %p103 = por %p101, %p102
      %p104 = scmp.ne.s32.totalorder %s93, %s94
      %p105 = scmp.eq.s32.totalorder %s21, 0
      %p106 = por %p104, %p105
      %p107 = scmp.ne.s32.totalorder %s93, %s94
      %p108 = scmp.eq.s32.totalorder %s22, 1
      %p109 = por %p107, %p108
      %p111 = scmp.ne.s32.totalorder %s94, %s110
      %p112 = scmp.eq.s32.totalorder %s22, 0
      %p113 = por %p111, %p112
      %s114 = ssub.s32 %s24, %s31
      %p115 = scmp.eq.s32.totalorder %s114, 0
      %s117 = sadd.s32 %s116, 1
      %s118 = scalar_select %p115, %s116, %s117
      %p121 = pneg %p115
      %p122 = scmp.eq.s32.totalorder %s16, 1
      %p123 = por %p121, %p122
      %p124 = scmp.ne.s32.totalorder %s116, %s119
      %p125 = scmp.eq.s32.totalorder %s16, 0
      %p126 = por %p124, %p125
      %p127 = scmp.ne.s32.totalorder %s116, %s119
      %p128 = scmp.eq.s32.totalorder %s21, 1
      %p129 = por %p127, %p128
      %p130 = scmp.ne.s32.totalorder %s119, %s120
      %p131 = scmp.eq.s32.totalorder %s21, 0
      %p132 = por %p130, %p131
      %p133 = scmp.ne.s32.totalorder %s119, %s120
      %p134 = scmp.eq.s32.totalorder %s22, 1
      %p135 = por %p133, %p134
      %p137 = scmp.ne.s32.totalorder %s120, %s136
      %p138 = scmp.eq.s32.totalorder %s22, 0
      %p139 = por %p137, %p138
      %s140 = ssub.s32 %s23, %s35
      %p141 = scmp.eq.s32.totalorder %s140, 0
      %s143 = sadd.s32 %s142, 1
      %s144 = scalar_select %p141, %s142, %s143
      %p147 = pneg %p141
      %p148 = scmp.eq.s32.totalorder %s16, 1
      %p149 = por %p147, %p148
      %p150 = scmp.ne.s32.totalorder %s142, %s145
      %p151 = scmp.eq.s32.totalorder %s16, 0
      %p152 = por %p150, %p151
      %p153 = scmp.ne.s32.totalorder %s142, %s145
      %p154 = scmp.eq.s32.totalorder %s21, 1
      %p155 = por %p153, %p154
      %p156 = scmp.ne.s32.totalorder %s145, %s146
      %p157 = scmp.eq.s32.totalorder %s21, 0
      %p158 = por %p156, %p157
      %p159 = scmp.ne.s32.totalorder %s145, %s146
      %p160 = scmp.eq.s32.totalorder %s22, 1
      %p161 = por %p159, %p160
      %p163 = scmp.ne.s32.totalorder %s146, %s162
      %p164 = scmp.eq.s32.totalorder %s22, 0
      %p165 = por %p163, %p164
      %p166 = scmp.le.s32.totalorder 1, %s16
      %p167 = scmp.lt.s32.totalorder %s16, 3
      %p168 = pnand %p166, %p167
      %p169 = pneg %p168
      // Predicated region
      $region9: #{fwd.1} parent=5 // pred_check
        _
      $region10: #{fwd.1} parent=5 // pred_check_branch
        %171 = sbr.rel (%p168) target = $region12
      $region11: #{fwd.1} parent=5 // pred_region
        %s172 = ssub.s32 %s16, 1
        // Predicated region
        $region13: #{fwd.1} parent=11 // pred_check
          %p173 = pneg %p54
        $region14: #{fwd.1} parent=11 // pred_check_branch
          %175 = sbr.rel (%p173) target = $region16
        $region15: #{fwd.1} parent=11 // pred_region
          %p176 = scmp.lt.s32.totalorder %s25, 0
          %s177 = scalar_select %p176, %s25, 0
          %s178 = smul.addr %s177, 8
          %s179 = scalar_lea.vmem %s0, %s178
        $region16: #{fwd.1} parent=11 // pred_fallthru
          _
      $region12: #{fwd.1} parent=5 // pred_fallthru
        _
      %p180 = scmp.lt.s32.totalorder %s16, 2
      // Predicated region
      $region17: #{fwd.1} parent=5 // pred_check
        %p181 = pneg %p180
      $region18: #{fwd.1} parent=5 // pred_check_branch
        %183 = sbr.rel (%p181) target = $region20
      $region19: #{fwd.1} parent=5 // pred_region
        // Predicated region
        $region21: #{fwd.1} parent=19 // pred_check
          %p184 = pneg %p74
        $region22: #{fwd.1} parent=19 // pred_check_branch
          %186 = sbr.rel (%p184) target = $region24
        $region23: #{fwd.1} parent=19 // pred_region
          %s187 = sand.u32 %s64, 1
          %s188 = scalar_lea.sflag [#allocation4], %s187
          %s189 = sand.u32 %s64, 1
          %s190 = smul.addr %s189, 128
          %s191 = scalar_lea.vmem [#allocation3], %s190
          %s193 = ssub.s32 2048, 2048
          %194 = vsyncadd %s188, %s193
          %s195 = smul.addr %s24, 16
          %s196 = smul.addr %s195, 128
          %s197 = scalar_lea.hbm %s1, %s196
          %s198 = sshll.u32 %s191, 4
          %s199 = int_to_ptr.vmem [resolvable:$true] %s198
          %204 = dma.hbm_to_vmem [thread:$0]  %s197, 2048, %s199, %s188, 128, 128, 8
        $region24: #{fwd.1} parent=19 // pred_fallthru
          _
        // Predicated region
        $region25: #{fwd.1} parent=19 // pred_check
          %p205 = pneg %p100
        $region26: #{fwd.1} parent=19 // pred_check_branch
          %207 = sbr.rel (%p205) target = $region28
        $region27: #{fwd.1} parent=19 // pred_region
          %s208 = sand.u32 %s90, 1
          %s209 = scalar_lea.sflag [#allocation6], %s208
          %s210 = sand.u32 %s90, 1
          %s211 = smul.addr %s210, 128
          %s212 = scalar_lea.vmem [#allocation5], %s211
          %s214 = ssub.s32 2048, 2048
          %215 = vsyncadd %s209, %s214
          %s216 = smul.addr %s24, 16
          %s217 = smul.addr %s216, 128
          %s218 = scalar_lea.hbm %s2, %s217
          %s219 = sshll.u32 %s212, 4
          %s220 = int_to_ptr.vmem [resolvable:$true] %s219
          %225 = dma.hbm_to_vmem [thread:$0]  %s218, 2048, %s220, %s209, 128, 128, 8
        $region28: #{fwd.1} parent=19 // pred_fallthru
          _
        // Predicated region
        $region29: #{fwd.1} parent=19 // pred_check
          %p226 = pneg %p126
        $region30: #{fwd.1} parent=19 // pred_check_branch
          %228 = sbr.rel (%p226) target = $region32
        $region31: #{fwd.1} parent=19 // pred_region
          %p229 = scmp.lt.s32.totalorder %s24, 1
          %s230 = scalar_select %p229, %s24, 1
          %s231 = scalar_lea.vmem %s3, %s230
        $region32: #{fwd.1} parent=19 // pred_fallthru
          _
      $region20: #{fwd.1} parent=5 // pred_fallthru
        _
      %p232 = scmp.le.s32.totalorder 1, %s16
      %p233 = scmp.lt.s32.totalorder %s16, 3
      %p234 = pnand %p232, %p233
      %p235 = pneg %p234
      // Predicated region
      $region33: #{fwd.1} parent=5 // pred_check
        _
      $region34: #{fwd.1} parent=5 // pred_check_branch
        %237 = sbr.rel (%p234) target = $region36
      $region35: #{fwd.1} parent=5 // pred_region
        %s238 = ssub.s32 %s16, 1
        %s239 = sand.u32 %s67, 1
        %s240 = scalar_lea.sflag [#allocation4], %s239
        %s241 = sand.u32 %s67, 1
        %s242 = smul.addr %s241, 128
        %s243 = scalar_lea.vmem [#allocation3], %s242
        // Predicated region
        $region37: #{fwd.1} parent=35 // pred_check
          %p244 = pneg %p80
        $region38: #{fwd.1} parent=35 // pred_check_branch
          %246 = sbr.rel (%p244) target = $region40
        $region39: #{fwd.1} parent=35 // pred_region
          %247 = dma.done %s240, 2048
        $region40: #{fwd.1} parent=35 // pred_fallthru
          _
        %s248 = sand.u32 %s93, 1
        %s249 = scalar_lea.sflag [#allocation6], %s248
        %s250 = sand.u32 %s93, 1
        %s251 = smul.addr %s250, 128
        %s252 = scalar_lea.vmem [#allocation5], %s251
        // Predicated region
        $region41: #{fwd.1} parent=35 // pred_check
          %p253 = pneg %p106
        $region42: #{fwd.1} parent=35 // pred_check_branch
          %255 = sbr.rel (%p253) target = $region44
        $region43: #{fwd.1} parent=35 // pred_region
          %256 = dma.done %s249, 2048
        $region44: #{fwd.1} parent=35 // pred_fallthru
          _
        %p257 = scmp.lt.s32.totalorder %s25, 0
        %s258 = scalar_select %p257, %s25, 0
        %s259 = smul.addr %s258, 8
        %s260 = scalar_lea.vmem %s0, %s259
        %p261 = pneg %p54
        %p262 = pneg %p51
        %s263 = sand.u32 %s67, 1
        %s264 = scalar_lea.sflag [#allocation4], %s263
        %s265 = sand.u32 %s67, 1
        %s266 = smul.addr %s265, 128
        %s267 = scalar_lea.vmem [#allocation3], %s266
        %p268 = pneg %p80
        %p269 = pneg %p77
        %s270 = sand.u32 %s93, 1
        %s271 = scalar_lea.sflag [#allocation6], %s270
        %s272 = sand.u32 %s93, 1
        %s273 = smul.addr %s272, 128
        %s274 = scalar_lea.vmem [#allocation5], %s273
        %p275 = pneg %p106
        %p276 = pneg %p103
        %p277 = scmp.lt.s32.totalorder %s26, 1
        %s278 = scalar_select %p277, %s26, 1
        %s279 = scalar_lea.vmem %s3, %s278
        %p280 = pneg %p132
        %p281 = pneg %p129
        %p282 = pneg %p158
        %p283 = pneg %p155
        %p284 = scmp.lt.s32.totalorder %s25, 0
        %s285 = scalar_select %p284, %s25, 0
        %s286 = smul.addr %s285, 8
        %s287 = scalar_lea.vmem %s4, %s286
        %p288 = scmp.lt.s32.totalorder %s25, 0
        %s289 = scalar_select %p288, %s25, 0
        %s290 = smul.addr %s289, 8
        %s291 = scalar_lea.vmem %s0, %s290
        %p292 = scmp.lt.s32.totalorder %s26, 1
        %s293 = scalar_select %p292, %s26, 1
        %s294 = scalar_lea.vmem %s3, %s293
        %p295 = scmp.lt.s32.totalorder %s25, 0
        %s296 = scalar_select %p295, %s25, 0
        %s297 = smul.addr %s296, 8
        %s298 = scalar_lea.vmem %s4, %s297
        %p299 = scmp.eq.s32.totalorder %s26, 0
        // Predicated region
        $region45: #{fwd.1} parent=35 // pred_check
          %p300 = pneg %p299
        $region46: #{fwd.1} parent=35 // pred_check_branch
          %302 = sbr.rel (%p300) target = $region48
        $region47: #{fwd.1} parent=35 // pred_region
          %v303 = vld [vmem:[%s291] sm:$0xff]
          %304 = vst [vmem:[#allocation2] sm:$0xff] %v303
        $region48: #{fwd.1} parent=35 // pred_fallthru
          _
        %v305 = vld [vmem:[#allocation2] sm:$0xff]
        %v306 = vld [vmem:[%s243] sm:$0xff]
        %v307 = vld [vmem:[%s243 + $0x8] sm:$0xff]
        %v308 = vld [vmem:[%s243 + $0x10] sm:$0xff]
        %v309 = vld [vmem:[%s243 + $0x18] sm:$0xff]
        %v310 = vld [vmem:[%s243 + $0x20] sm:$0xff]
        %v311 = vld [vmem:[%s243 + $0x28] sm:$0xff]
        %v312 = vld [vmem:[%s243 + $0x30] sm:$0xff]
        %v313 = vld [vmem:[%s243 + $0x38] sm:$0xff]
        %v314 = vld [vmem:[%s243 + $0x40] sm:$0xff]
        %v315 = vld [vmem:[%s243 + $0x48] sm:$0xff]
        %v316 = vld [vmem:[%s243 + $0x50] sm:$0xff]
        %v317 = vld [vmem:[%s243 + $0x58] sm:$0xff]
        %v318 = vld [vmem:[%s243 + $0x60] sm:$0xff]
        %v319 = vld [vmem:[%s243 + $0x68] sm:$0xff]
        %v320 = vld [vmem:[%s243 + $0x70] sm:$0xff]
        %v321 = vld [vmem:[%s243 + $0x78] sm:$0xff]
        %v322 = vld [vmem:[%s294] sm:$0x1]
        %v324 = vlaneseq
        %v325 = vshrl.u32 %v324, 7
        %v326 = vsub.s32 0, %v325
        %v327 = vrot.slane %v322, %v326
        %329 = vmatprep.subr.mxu0 0.0
        %330 = vmatpush1.msra.mxu0 %v321
        %331 = vmatprep.subr.mxu0 0.0
        %332 = vmatpush1.msra.mxu0 %v320
        %333 = vmatprep.subr.mxu0 0.0
        %334 = vmatpush1.msra.mxu0 %v319
        %335 = vmatprep.subr.mxu0 0.0
        %336 = vmatpush1.msra.mxu0 %v318
        %337 = vmatprep.subr.mxu0 0.0
        %338 = vmatpush1.msra.mxu0 %v317
        %339 = vmatprep.subr.mxu0 0.0
        %340 = vmatpush1.msra.mxu0 %v316
        %341 = vmatprep.subr.mxu0 0.0
        %342 = vmatpush1.msra.mxu0 %v315
        %343 = vmatprep.subr.mxu0 0.0
        %344 = vmatpush1.msra.mxu0 %v314
        %345 = vmatprep.subr.mxu0 0.0
        %346 = vmatpush1.msra.mxu0 %v313
        %347 = vmatprep.subr.mxu0 0.0
        %348 = vmatpush1.msra.mxu0 %v312
        %349 = vmatprep.subr.mxu0 0.0
        %350 = vmatpush1.msra.mxu0 %v311
        %351 = vmatprep.subr.mxu0 0.0
        %352 = vmatpush1.msra.mxu0 %v310
        %353 = vmatprep.subr.mxu0 0.0
        %354 = vmatpush1.msra.mxu0 %v309
        %355 = vmatprep.subr.mxu0 0.0
        %356 = vmatpush1.msra.mxu0 %v308
        %357 = vmatprep.subr.mxu0 0.0
        %358 = vmatpush1.msra.mxu0 %v307
        %359 = vmatprep.subr.mxu0 0.0
        %360 = vmatpush1.msra.mxu0 %v306
        %361 = vmatprep.subr.mxu0 0.0
        %362 = vmatpush2.msra.mxu0 0.0
        %363 = vmatprep.subr.mxu0 0.0
        %364 = vmatpush2.msra.mxu0 0.0
        %365 = vmatprep.subr.mxu0 0.0
        %366 = vmatpush2.msra.mxu0 0.0
        %367 = vmatprep.subr.mxu0 0.0
        %368 = vmatpush2.msra.mxu0 0.0
        %369 = vmatprep.subr.mxu0 0.0
        %370 = vmatpush2.msra.mxu0 0.0
        %371 = vmatprep.subr.mxu0 0.0
        %372 = vmatpush2.msra.mxu0 0.0
        %373 = vmatprep.subr.mxu0 0.0
        %374 = vmatpush2.msra.mxu0 0.0
        %375 = vmatprep.subr.mxu0 0.0
        %376 = vmatpush2.msra.mxu0 0.0
        %377 = vmatprep.subr.mxu0 0.0
        %378 = vmatpush2.msra.mxu0 0.0
        %379 = vmatprep.subr.mxu0 0.0
        %380 = vmatpush2.msra.mxu0 0.0
        %381 = vmatprep.subr.mxu0 0.0
        %382 = vmatpush2.msra.mxu0 0.0
        %383 = vmatprep.subr.mxu0 0.0
        %384 = vmatpush2.msra.mxu0 0.0
        %385 = vmatprep.subr.mxu0 0.0
        %386 = vmatpush2.msra.mxu0 0.0
        %387 = vmatprep.subr.mxu0 0.0
        %388 = vmatpush2.msra.mxu0 0.0
        %389 = vmatprep.subr.mxu0 0.0
        %390 = vmatpush2.msra.mxu0 0.0
        %391 = vmatprep.subr.mxu0 0.0
        %392 = vmatpush2.msra.mxu0 0.0
        %393 = vmatprep.mubr.f32.mxu0 0.0
        %394 = vmatmul.mubr.f32.gmra.mxu0 %v305
        %v395 = vpop.f32.mrf.mxu0
        %v396 = vadd.f32 %v327, %v395
        %v397 = vpop.f32.mrf.mxu0
        %398 = vdwg.mxu0
        %v399 = vmax.f32 %v396, 0.0
        %v400 = vld [vmem:[%s252] sm:$0xff]
        %v401 = vld [vmem:[%s252 + $0x8] sm:$0xff]
        %v402 = vld [vmem:[%s252 + $0x10] sm:$0xff]
        %v403 = vld [vmem:[%s252 + $0x18] sm:$0xff]
        %v404 = vld [vmem:[%s252 + $0x20] sm:$0xff]
        %v405 = vld [vmem:[%s252 + $0x28] sm:$0xff]
        %v406 = vld [vmem:[%s252 + $0x30] sm:$0xff]
        %v407 = vld [vmem:[%s252 + $0x38] sm:$0xff]
        %v408 = vld [vmem:[%s252 + $0x40] sm:$0xff]
        %v409 = vld [vmem:[%s252 + $0x48] sm:$0xff]
        %v410 = vld [vmem:[%s252 + $0x50] sm:$0xff]
        %v411 = vld [vmem:[%s252 + $0x58] sm:$0xff]
        %v412 = vld [vmem:[%s252 + $0x60] sm:$0xff]
        %v413 = vld [vmem:[%s252 + $0x68] sm:$0xff]
        %v414 = vld [vmem:[%s252 + $0x70] sm:$0xff]
        %v415 = vld [vmem:[%s252 + $0x78] sm:$0xff]
        %416 = vmatprep.subr.mxu0 0.0
        %417 = vmatpush1.msra.mxu0 %v415
        %418 = vmatprep.subr.mxu0 0.0
        %419 = vmatpush1.msra.mxu0 %v414
        %420 = vmatprep.subr.mxu0 0.0
        %421 = vmatpush1.msra.mxu0 %v413
        %422 = vmatprep.subr.mxu0 0.0
        %423 = vmatpush1.msra.mxu0 %v412
        %424 = vmatprep.subr.mxu0 0.0
        %425 = vmatpush1.msra.mxu0 %v411
        %426 = vmatprep.subr.mxu0 0.0
        %427 = vmatpush1.msra.mxu0 %v410
        %428 = vmatprep.subr.mxu0 0.0
        %429 = vmatpush1.msra.mxu0 %v409
        %430 = vmatprep.subr.mxu0 0.0
        %431 = vmatpush1.msra.mxu0 %v408
        %432 = vmatprep.subr.mxu0 0.0
        %433 = vmatpush1.msra.mxu0 %v407
        %434 = vmatprep.subr.mxu0 0.0
        %435 = vmatpush1.msra.mxu0 %v406
        %436 = vmatprep.subr.mxu0 0.0
        %437 = vmatpush1.msra.mxu0 %v405
        %438 = vmatprep.subr.mxu0 0.0
        %439 = vmatpush1.msra.mxu0 %v404
        %440 = vmatprep.subr.mxu0 0.0
        %441 = vmatpush1.msra.mxu0 %v403
        %442 = vmatprep.subr.mxu0 0.0
        %443 = vmatpush1.msra.mxu0 %v402
        %444 = vmatprep.subr.mxu0 0.0
        %445 = vmatpush1.msra.mxu0 %v401
        %446 = vmatprep.subr.mxu0 0.0
        %447 = vmatpush1.msra.mxu0 %v400
        %448 = vmatprep.subr.mxu0 0.0
        %449 = vmatpush2.msra.mxu0 0.0
        %450 = vmatprep.subr.mxu0 0.0
        %451 = vmatpush2.msra.mxu0 0.0
        %452 = vmatprep.subr.mxu0 0.0
        %453 = vmatpush2.msra.mxu0 0.0
        %454 = vmatprep.subr.mxu0 0.0
        %455 = vmatpush2.msra.mxu0 0.0
        %456 = vmatprep.subr.mxu0 0.0
        %457 = vmatpush2.msra.mxu0 0.0
        %458 = vmatprep.subr.mxu0 0.0
        %459 = vmatpush2.msra.mxu0 0.0
        %460 = vmatprep.subr.mxu0 0.0
        %461 = vmatpush2.msra.mxu0 0.0
        %462 = vmatprep.subr.mxu0 0.0
        %463 = vmatpush2.msra.mxu0 0.0
        %464 = vmatprep.subr.mxu0 0.0
        %465 = vmatpush2.msra.mxu0 0.0
        %466 = vmatprep.subr.mxu0 0.0
        %467 = vmatpush2.msra.mxu0 0.0
        %468 = vmatprep.subr.mxu0 0.0
        %469 = vmatpush2.msra.mxu0 0.0
        %470 = vmatprep.subr.mxu0 0.0
        %471 = vmatpush2.msra.mxu0 0.0
        %472 = vmatprep.subr.mxu0 0.0
        %473 = vmatpush2.msra.mxu0 0.0
        %474 = vmatprep.subr.mxu0 0.0
        %475 = vmatpush2.msra.mxu0 0.0
        %476 = vmatprep.subr.mxu0 0.0
        %477 = vmatpush2.msra.mxu0 0.0
        %478 = vmatprep.subr.mxu0 0.0
        %479 = vmatpush2.msra.mxu0 0.0
        %480 = vmatprep.mubr.f32.mxu0 0.0
        %481 = vmatmul.mubr.f32.gmra.mxu0 %v399
        %v482 = vpop.f32.mrf.mxu0
        %v483 = vadd.f32 0.0, %v482
        %v484 = vpop.f32.mrf.mxu0
        %485 = vdwg.mxu0
        %v486 = vadd.f32 %v305, %v483
        %487 = vst [vmem:[#allocation2] sm:$0xff] %v486
        %p488 = scmp.eq.s32.totalorder %s26, 1
        // Predicated region
        $region49: #{fwd.1} parent=35 // pred_check
          %p489 = pneg %p488
        $region50: #{fwd.1} parent=35 // pred_check_branch
          %491 = sbr.rel (%p489) target = $region52
        $region51: #{fwd.1} parent=35 // pred_region
          %v492 = vld [vmem:[#allocation2] sm:$0xff]
          %493 = vst [vmem:[%s298] sm:$0xff] %v492
        $region52: #{fwd.1} parent=35 // pred_fallthru
          _
        %p494 = scmp.lt.s32.totalorder %s25, 0
        %s495 = scalar_select %p494, %s25, 0
        %s496 = smul.addr %s495, 8
        %s497 = scalar_lea.vmem %s4, %s496
        // Predicated region
        $region53: #{fwd.1} parent=35 // pred_check
          %p498 = pneg %p155
        $region54: #{fwd.1} parent=35 // pred_check_branch
          %500 = sbr.rel (%p498) target = $region56
        $region55: #{fwd.1} parent=35 // pred_region
          _
        $region56: #{fwd.1} parent=35 // pred_fallthru
          _
        // Predicated region
        $region57: #{fwd.1} parent=35 // pred_check
          %p501 = pneg %p155
        $region58: #{fwd.1} parent=35 // pred_check_branch
          %503 = sbr.rel (%p501) target = $region60
        $region59: #{fwd.1} parent=35 // pred_region
          %p504 = scmp.lt.s32.totalorder %s25, 0
          %s505 = scalar_select %p504, %s25, 0
          %s506 = smul.addr %s505, 8
          %s507 = scalar_lea.vmem %s4, %s506
        $region60: #{fwd.1} parent=35 // pred_fallthru
          _
      $region36: #{fwd.1} parent=5 // pred_fallthru
        _
      %p508 = scmp.le.s32.totalorder 2, %s16
      // Predicated region
      $region61: #{fwd.1} parent=5 // pred_check
        %p509 = pneg %p508
      $region62: #{fwd.1} parent=5 // pred_check_branch
        %511 = sbr.rel (%p509) target = $region64
      $region63: #{fwd.1} parent=5 // pred_region
        %s512 = ssub.s32 %s16, 2
      $region64: #{fwd.1} parent=5 // pred_fallthru
        _
    $region6: #{fwd.1} parent=1 // loop_footer
      %s20 = sadd.s32 1, %s16
    $region7: #{fwd.1} parent=1 // loop_footer_branch
      %15 = sbr.rel target = $region3
    $region8: #{fwd.1} parent=1 // loop_exit
      _
    %513 = vsyncpa [#allocation4], 1
    %s514 = scalar_lea.sflag [#allocation4], 1
    %515 = vsyncpa %s514, 1
    %516 = vsyncpa [#allocation6], 1
    %s517 = scalar_lea.sflag [#allocation6], 1
    %518 = vsyncpa %s517, 1

</llo_original>
